<compile_context>
chip_gen: v5e
topology: v5e:2x2
jax: 0.10.0
libtpu: 0.0.40
codegen_flags: <defaults>
</compile_context>

<pallas_src>
import functools

import jax
import jax.numpy as jnp
import numpy as np
from jax.experimental import pallas as pl
from jax.experimental.pallas import tpu as pltpu


def _round_up(x, m):
    return (x + m - 1) // m * m


# ------------------------------ Pallas kernels ------------------------------

def _im2col_matmul(prev, cur, w_ref, *, K, dilation, l_tile):
    """Folded K-tap dilated causal conv on one time tile.

    prev/cur: (l_tile, C_in) consecutive time tiles (prev already zero-masked
    at the sequence start).  w_ref: (K*C_in, C_out).  Returns f32 (l_tile, C_out).
    """
    P = dilation * (K - 1)
    buf = jnp.concatenate([prev, cur], axis=0)                 # (2*l_tile, C_in)
    taps = [buf[l_tile - P + k * dilation:
                2 * l_tile - P + k * dilation, :] for k in range(K)]
    im2col = jnp.concatenate(taps, axis=-1)                    # (l_tile, K*C_in)
    return jnp.dot(im2col, w_ref[...], preferred_element_type=jnp.float32)


def _conv_relu_kernel(xp_ref, xc_ref, w_ref, b_ref, o_ref, *, K, dilation, l_tile):
    """o = relu(causal_dilated_conv(x) + b) for one (n, L-tile) block."""
    j = pl.program_id(1)
    xp = xp_ref[...] * (j > 0).astype(xp_ref.dtype)            # zero halo at seq start
    acc = _im2col_matmul(xp, xc_ref[...], w_ref, K=K, dilation=dilation,
                         l_tile=l_tile)
    acc = acc + b_ref[...]                                      # f32 epilogue
    o_ref[...] = jnp.maximum(acc, 0.0).astype(o_ref.dtype)


def _conv_residual_kernel(hp_ref, hc_ref, xc_ref, w_ref, b_ref, wd_ref, bd_ref,
                          out_ref, y_ref, *, K, dilation, l_tile, has_downsample):
    """out = relu(conv2(h) + b); y = relu(out + res) with res = downsample(x) or x."""
    j = pl.program_id(1)
    hp = hp_ref[...] * (j > 0).astype(hp_ref.dtype)
    acc = _im2col_matmul(hp, hc_ref[...], w_ref, K=K, dilation=dilation,
                         l_tile=l_tile)
    out = jnp.maximum(acc + b_ref[...], 0.0)                    # f32 epilogue
    if has_downsample:                                           # fused 1x1 conv
        res = jnp.dot(xc_ref[...], wd_ref[...],
                      preferred_element_type=jnp.float32) + bd_ref[...]
    else:
        res = xc_ref[...].astype(jnp.float32)
    out_ref[...] = out.astype(out_ref.dtype)
    y_ref[...] = jnp.maximum(out + res, 0.0).astype(y_ref.dtype)


# ------------------------------ pallas_call wrappers -------------------------

_COMPILER_PARAMS = pltpu.CompilerParams(
    dimension_semantics=("parallel", "parallel"),
    vmem_limit_bytes=32 * 1024 * 1024)


def _conv1_call(x_p, w_flat, b2, *, K, dilation, l_tile, out_dtype):
    N, L_pad, C_in = x_p.shape
    C_out = w_flat.shape[1]
    grid = (N, L_pad // l_tile)
    kern = functools.partial(_conv_relu_kernel, K=K, dilation=dilation,
                             l_tile=l_tile)
    return pl.pallas_call(
        kern,
        out_shape=jax.ShapeDtypeStruct((N, L_pad, C_out), out_dtype),
        grid_spec=pltpu.PrefetchScalarGridSpec(
            num_scalar_prefetch=0, grid=grid,
            in_specs=[
                pl.BlockSpec((None, l_tile, C_in),
                             lambda n, j: (n, jnp.maximum(j - 1, 0), 0)),
                pl.BlockSpec((None, l_tile, C_in), lambda n, j: (n, j, 0)),
                pl.BlockSpec((K * C_in, C_out), lambda n, j: (0, 0)),
                pl.BlockSpec((1, C_out), lambda n, j: (0, 0)),
            ],
            out_specs=pl.BlockSpec((None, l_tile, C_out), lambda n, j: (n, j, 0)),
        ),
        compiler_params=_COMPILER_PARAMS,
    )(x_p, x_p, w_flat, b2)


def _conv2_residual_call(h_p, x_p, w_flat, b2, wd, bd, *, K, dilation, l_tile,
                         has_downsample, out_dtype):
    N, L_pad, C_mid = h_p.shape
    C_in = x_p.shape[2]
    C_out = w_flat.shape[1]
    grid = (N, L_pad // l_tile)
    kern = functools.partial(_conv_residual_kernel, K=K, dilation=dilation,
                             l_tile=l_tile, has_downsample=has_downsample)
    return pl.pallas_call(
        kern,
        out_shape=(jax.ShapeDtypeStruct((N, L_pad, C_out), out_dtype),
                   jax.ShapeDtypeStruct((N, L_pad, C_out), out_dtype)),
        grid_spec=pltpu.PrefetchScalarGridSpec(
            num_scalar_prefetch=0, grid=grid,
            in_specs=[
                pl.BlockSpec((None, l_tile, C_mid),
                             lambda n, j: (n, jnp.maximum(j - 1, 0), 0)),
                pl.BlockSpec((None, l_tile, C_mid), lambda n, j: (n, j, 0)),
                pl.BlockSpec((None, l_tile, C_in), lambda n, j: (n, j, 0)),
                pl.BlockSpec((K * C_mid, C_out), lambda n, j: (0, 0)),
                pl.BlockSpec((1, C_out), lambda n, j: (0, 0)),
                pl.BlockSpec((C_in, C_out), lambda n, j: (0, 0)),
                pl.BlockSpec((1, C_out), lambda n, j: (0, 0)),
            ],
            out_specs=[
                pl.BlockSpec((None, l_tile, C_out), lambda n, j: (n, j, 0)),
                pl.BlockSpec((None, l_tile, C_out), lambda n, j: (n, j, 0)),
            ],
        ),
        compiler_params=_COMPILER_PARAMS,
    )(h_p, h_p, x_p, w_flat, b2, wd, bd)


# ------------------------------ forward wrapper ------------------------------

def _weight_norm(v, g):
    # per-output-channel norm over (C_in, K), matching torch weight_norm(dim=0)
    norm = jnp.sqrt(jnp.sum(v * v, axis=(1, 2), keepdims=True))
    return g * v / norm


def temporal_block_forward(x_ncl, params, *, kernel_size, stride, dilation,
                           padding, compute_dtype=jnp.float32):
    """Replicates TemporalBlock.forward.  x_ncl: (N, C_in, L).
    Returns (out, relu(out + res)), both in NCL layout.
    compute_dtype: dtype fed to the MXU (f32, or bf16 on v6e/v7x); accumulation
    and epilogues stay f32."""
    assert stride == 1, "TemporalBlock residual add requires stride == 1"
    assert padding == dilation * (kernel_size - 1), \
        "expected causal TCN config: padding == dilation*(kernel_size-1)"
    # TODO(synk): stride>1 / non-causal padding Conv1d configs are not mapped.

    N, C_in, L = x_ncl.shape
    w1 = _weight_norm(params["conv1_v"], params["conv1_g"])     # (C_out, C_in, K)
    w2 = _weight_norm(params["conv2_v"], params["conv2_g"])     # (C_out, C_out, K)
    C_out, _, K = w1.shape
    has_downsample = params.get("down_w") is not None
    io_dtype = x_ncl.dtype

    # lane-dense channel padding; time tiled in multiples of 16 (bf16-safe)
    ci_p = _round_up(C_in, 128)
    co_p = _round_up(C_out, 128)
    halo = dilation * (K - 1)
    l_tile = max(_round_up(min(L, 256), 16), _round_up(halo, 16))
    L_pad = _round_up(L, l_tile)

    # activations: NCL -> NLC, zero-pad time (right) and channels
    x_nlc = jnp.transpose(x_ncl, (0, 2, 1))
    x_p = jnp.pad(x_nlc, ((0, 0), (0, L_pad - L),
                          (0, ci_p - C_in))).astype(compute_dtype)

    def prep_w(w, cin_pad, cout_pad):
        co, ci, k = w.shape
        wt = jnp.transpose(w, (2, 1, 0))                        # (K, C_in, C_out)
        wt = jnp.pad(wt, ((0, 0), (0, cin_pad - ci), (0, cout_pad - co)))
        return wt.reshape(k * cin_pad, cout_pad).astype(compute_dtype)

    def prep_b(b, cout_pad):
        return jnp.pad(b, (0, cout_pad - b.shape[0])).reshape(1, cout_pad) \
                  .astype(jnp.float32)

    w1_f = prep_w(w1, ci_p, co_p)
    b1_f = prep_b(params["conv1_b"], co_p)
    w2_f = prep_w(w2, co_p, co_p)
    b2_f = prep_b(params["conv2_b"], co_p)
    if has_downsample:
        wd_f = prep_w(params["down_w"], ci_p, co_p)             # (ci_p, co_p)
        bd_f = prep_b(params["down_b"], co_p)
    else:
        wd_f = jnp.zeros((ci_p, co_p), compute_dtype)
        bd_f = jnp.zeros((1, co_p), jnp.float32)

    # conv1 + bias + ReLU   (dropout1: identity / eval)
    # TODO(synk): training-mode dropout mask not implemented.
    h_p = _conv1_call(x_p, w1_f, b1_f, K=K, dilation=dilation,
                      l_tile=l_tile, out_dtype=compute_dtype)

    # conv2 + bias + ReLU fused with residual (+ 1x1 downsample) + final ReLU
    out_p, y_p = _conv2_residual_call(
        h_p, x_p, w2_f, b2_f, wd_f, bd_f, K=K, dilation=dilation,
        l_tile=l_tile, has_downsample=has_downsample, out_dtype=io_dtype)

    out = jnp.transpose(out_p[:, :L, :C_out], (0, 2, 1))
    y = jnp.transpose(y_p[:, :L, :C_out], (0, 2, 1))
    return out, y


# ------------------------------ pure-JAX reference ---------------------------

def _ref_conv1d(x_ncl, w, b, stride, padding, dilation):
    out = jax.lax.conv_general_dilated(
        x_ncl, w, window_strides=(stride,), padding=[(padding, padding)],
        rhs_dilation=(dilation,), dimension_numbers=("NCH", "OIH", "NCH"))
    return out + b[None, :, None]


def _ref_forward(x_ncl, params, *, stride, dilation, padding):
    def chomp(z):
        return z[:, :, :-padding] if padding else z
    w1 = _weight_norm(params["conv1_v"], params["conv1_g"])
    h = jax.nn.relu(chomp(_ref_conv1d(x_ncl, w1, params["conv1_b"],
                                      stride, padding, dilation)))
    w2 = _weight_norm(params["conv2_v"], params["conv2_g"])
    out = jax.nn.relu(chomp(_ref_conv1d(h, w2, params["conv2_b"],
                                        stride, padding, dilation)))
    if params.get("down_w") is not None:
        res = _ref_conv1d(x_ncl, params["down_w"], params["down_b"], 1, 0, 1)
    else:
        res = x_ncl
    return out, jax.nn.relu(out + res)


# ------------------------------ main -----------------------------------------

if __name__ == "__main__":
    N, C_in, C_out, L = 2, 4, 8, 16
    kernel_size, stride, dilation = 3, 1, 2
    padding = (kernel_size - 1) * dilation          # standard TCN causal config

    key = jax.random.PRNGKey(0)
    ks = jax.random.split(key, 7)

    # conv weights ~ N(0, 0.5) as in init_weights(); weight_norm g = ||v||.
    v1 = 0.5 * jax.random.normal(ks[0], (C_out, C_in, kernel_size), jnp.float32)
    v2 = 0.5 * jax.random.normal(ks[1], (C_out, C_out, kernel_size), jnp.float32)
    dw = 0.5 * jax.random.normal(ks[2], (C_out, C_in, 1), jnp.float32)
    params = {
        "conv1_v": v1,
        "conv1_g": jnp.sqrt(jnp.sum(v1 * v1, axis=(1, 2), keepdims=True)),
        "conv1_b": 0.1 * jax.random.normal(ks[3], (C_out,), jnp.float32),
        "conv2_v": v2,
        "conv2_g": jnp.sqrt(jnp.sum(v2 * v2, axis=(1, 2), keepdims=True)),
        "conv2_b": 0.1 * jax.random.normal(ks[4], (C_out,), jnp.float32),
        "down_w": dw,                                # n_inputs != n_outputs
        "down_b": 0.1 * jax.random.normal(ks[5], (C_out,), jnp.float32),
    }

    x = jax.random.normal(ks[6], (N, C_in, L), jnp.float32)   # NCL like PyTorch

    ref_out, ref_y = _ref_forward(x, params, stride=stride, dilation=dilation,
                                  padding=padding)

    # float32 path (tight tolerance)
    out, y = temporal_block_forward(
        x, params, kernel_size=kernel_size, stride=stride,
        dilation=dilation, padding=padding, compute_dtype=jnp.float32)
    out = jax.block_until_ready(out)
    y = jax.block_until_ready(y)
    np.testing.assert_allclose(np.asarray(out), np.asarray(ref_out),
                               rtol=1e-4, atol=1e-4)
    np.testing.assert_allclose(np.asarray(y), np.asarray(ref_y),
                               rtol=1e-4, atol=1e-4)

    # bf16 matmul inputs / f32 accumulate (v6e / v7x throughput path)
    out_b, y_b = temporal_block_forward(
        x, params, kernel_size=kernel_size, stride=stride,
        dilation=dilation, padding=padding, compute_dtype=jnp.bfloat16)
    out_b = jax.block_until_ready(out_b)
    y_b = jax.block_until_ready(y_b)
    np.testing.assert_allclose(np.asarray(out_b), np.asarray(ref_out),
                               rtol=1e-1, atol=1e-1)
    np.testing.assert_allclose(np.asarray(y_b), np.asarray(ref_y),
                               rtol=1e-1, atol=1e-1)

    print("KERNEL_OK")
</pallas_src>

<mosaic_0001>
module attributes {stable_mosaic.version = 11 : i64} {
  func.func @_conv_relu_kernel(%arg0: i32, %arg1: i32, %arg2: memref<1x16x128xf32, #tpu.memory_space<vmem>>, %arg3: memref<1x16x128xf32, #tpu.memory_space<vmem>>, %arg4: memref<384x128xf32, #tpu.memory_space<vmem>>, %arg5: memref<1x128xf32, #tpu.memory_space<vmem>>, %arg6: memref<1x16x128xf32, #tpu.memory_space<vmem>>) attributes {dimension_semantics = [#tpu.dimension_semantics<parallel>, #tpu.dimension_semantics<parallel>], iteration_bounds = array<i64: 2, 1>, scalar_prefetch = 0 : i64, scratch_operands = 0 : i64, tpu.core_type = #tpu.core_type<tc>, window_params = [{transform_indices = @transform_0, window_bounds = array<i64: 1, 16, 128>}, {transform_indices = @transform_1, window_bounds = array<i64: 1, 16, 128>}, {pipeline_mode = #tpu.pipeline_mode<synchronous>, transform_indices = @transform_2, window_bounds = array<i64: 384, 128>}, {pipeline_mode = #tpu.pipeline_mode<synchronous>, transform_indices = @transform_3, window_bounds = array<i64: 1, 128>}, {transform_indices = @transform_4, window_bounds = array<i64: 1, 16, 128>}]} {
    %c0 = arith.constant 0 : index
    %c0_0 = arith.constant 0 : index
    %c0_1 = arith.constant 0 : index
    %0 = vector.load %arg2[%c0, %c0_0, %c0_1] : memref<1x16x128xf32, #tpu.memory_space<vmem>>, vector<1x16x128xf32>
    %1 = vector.shape_cast %0 : vector<1x16x128xf32> to vector<16x128xf32>
    %c0_i32 = arith.constant 0 : i32
    %2 = arith.cmpi sgt, %arg1, %c0_i32 : i32
    %3 = arith.extui %2 : i1 to i32
    %4 = arith.sitofp %3 : i32 to f32
    %5 = vector.broadcast %4 : f32 to vector<16x128xf32>
    %6 = arith.mulf %1, %5 : vector<16x128xf32>
    %c0_2 = arith.constant 0 : index
    %c0_3 = arith.constant 0 : index
    %c0_4 = arith.constant 0 : index
    %7 = vector.load %arg3[%c0_2, %c0_3, %c0_4] : memref<1x16x128xf32, #tpu.memory_space<vmem>>, vector<1x16x128xf32>
    %8 = vector.shape_cast %7 : vector<1x16x128xf32> to vector<16x128xf32>
    %9 = tpu.concatenate %6, %8 in 0 : vector<16x128xf32>, vector<16x128xf32> -> vector<32x128xf32>
    %10 = vector.extract_strided_slice %9 {offsets = [12, 0], sizes = [16, 128], strides = [1, 1]} : vector<32x128xf32> to vector<16x128xf32>
    %11 = vector.extract_strided_slice %9 {offsets = [14, 0], sizes = [16, 128], strides = [1, 1]} : vector<32x128xf32> to vector<16x128xf32>
    %12 = vector.extract_strided_slice %9 {offsets = [16, 0], sizes = [16, 128], strides = [1, 1]} : vector<32x128xf32> to vector<16x128xf32>
    %13 = tpu.concatenate %10, %11, %12 in 1 : vector<16x128xf32>, vector<16x128xf32>, vector<16x128xf32> -> vector<16x384xf32>
    %c0_5 = arith.constant 0 : index
    %c0_6 = arith.constant 0 : index
    %14 = vector.load %arg4[%c0_5, %c0_6] : memref<384x128xf32, #tpu.memory_space<vmem>>, vector<384x128xf32>
    %cst = arith.constant dense<0.000000e+00> : vector<16x128xf32>
    %15 = tpu.matmul %13, %14, %cst {dimension_numbers = #tpu.dot_dimension_numbers<[1], [0], [0], [1], [0, 0, 1, 1], [], []>} : vector<16x384xf32>, vector<384x128xf32>, vector<16x128xf32> -> vector<16x128xf32>
    %c0_7 = arith.constant 0 : index
    %c0_8 = arith.constant 0 : index
    %16 = vector.load %arg5[%c0_7, %c0_8] : memref<1x128xf32, #tpu.memory_space<vmem>>, vector<1x128xf32>
    %17 = vector.broadcast %16 : vector<1x128xf32> to vector<16x128xf32>
    %18 = arith.addf %15, %17 : vector<16x128xf32>
    %cst_9 = arith.constant 0.000000e+00 : f32
    %19 = vector.broadcast %cst_9 : f32 to vector<16x128xf32>
    %20 = arith.maximumf %18, %19 : vector<16x128xf32>
    %c0_10 = arith.constant 0 : index
    %c0_11 = arith.constant 0 : index
    %c0_12 = arith.constant 0 : index
    %21 = vector.load %arg6[%c0_10, %c0_11, %c0_12] : memref<1x16x128xf32, #tpu.memory_space<vmem>>, vector<1x16x128xf32>
    %22 = vector.shape_cast %21 : vector<1x16x128xf32> to vector<16x128xf32>
    %23 = vector.shape_cast %20 : vector<16x128xf32> to vector<1x16x128xf32>
    tpu.vector_store %arg6[%c0_10, %c0_11, %c0_12], %23 {strides = array<i32>} : memref<1x16x128xf32, #tpu.memory_space<vmem>>, vector<1x16x128xf32>,
    return
  }
  func.func @transform_0(%arg0: i32, %arg1: i32) -> (i32, i32, i32) {
    %c1_i32 = arith.constant 1 : i32
    %0 = arith.subi %arg1, %c1_i32 : i32
    %c0_i32 = arith.constant 0 : i32
    %1 = arith.maxsi %0, %c0_i32 : i32
    %c0_i32_0 = arith.constant 0 : i32
    %c0_i32_1 = arith.constant 0 : i32
    return %arg0, %1, %c0_i32_0 : i32, i32, i32
  }
  func.func @transform_1(%arg0: i32, %arg1: i32) -> (i32, i32, i32) {
    %c0_i32 = arith.constant 0 : i32
    %c0_i32_0 = arith.constant 0 : i32
    return %arg0, %arg1, %c0_i32 : i32, i32, i32
  }
  func.func @transform_2(%arg0: i32, %arg1: i32) -> (i32, i32) {
    %c0_i32 = arith.constant 0 : i32
    %c0_i32_0 = arith.constant 0 : i32
    %c0_i32_1 = arith.constant 0 : i32
    return %c0_i32, %c0_i32_0 : i32, i32
  }
  func.func @transform_3(%arg0: i32, %arg1: i32) -> (i32, i32) {
    %c0_i32 = arith.constant 0 : i32
    %c0_i32_0 = arith.constant 0 : i32
    %c0_i32_1 = arith.constant 0 : i32
    return %c0_i32, %c0_i32_0 : i32, i32
  }
  func.func @transform_4(%arg0: i32, %arg1: i32) -> (i32, i32, i32) {
    %c0_i32 = arith.constant 0 : i32
    %c0_i32_0 = arith.constant 0 : i32
    return %arg0, %arg1, %c0_i32 : i32, i32, i32
  }
}

</mosaic_0001>

<llo_original>
// kernel: tpu_custom_call.1
$region0: #{tpu_custom_call.1}
  #allocation0 [shape = 'u32[]', space=smem, size = 0x4, offset = 0x4, fixed_abs, tag = 'smem constant byte address 0x4 - core index']
  #allocation1 [shape = 'u32[72,128]{1,0:T(1,128)}', space=vmem, size = 0x9000, scoped, tag = 'internal scratch']
  %s0 = inlined_call_operand.hbm [shape: f32[2,16,128], index: 0, kind: input, shape index: {}]
  %s1 = inlined_call_operand.hbm [shape: f32[2,16,128], index: 1, kind: input, shape index: {}]
  %s2 = inlined_call_operand.hbm [shape: f32[384,128], index: 2, kind: input, shape index: {}]
  %s3 = inlined_call_operand.vmem [shape: f32[1,128], index: 3, kind: input, shape index: {}]
  %s4 = inlined_call_operand.hbm [shape: f32[2,16,128], index: 4, kind: output, shape index: {}]
  %s5 = sld [smem:[#allocation0]]
  $region61: #{tpu_custom_call.1} parent=0
    _
  %s7 = ssub.s32 1, %s5
  %s8 = scalar_select 0, %s7, %s5
  $region1: #{tpu_custom_call.1} parent=0
    #allocation2 [shape = 'u8[16384]{0}', space=vmem, size = 0x4000, scoped, tag = 'input window, operand 0']
    #allocation3 [shape = 's32[2]{0}', space=sflag, size = 0x8, scoped, tag = 'scoped memory for tpu_custom_call.1']
    #allocation4 [shape = 's32[2]{0}', space=sflag, size = 0x8, scoped, tag = 'scoped memory for tpu_custom_call.1']
    #allocation5 [shape = 'u8[16384]{0}', space=vmem, size = 0x4000, scoped, tag = 'input window, operand 1']
    #allocation6 [shape = 's32[2]{0}', space=sflag, size = 0x8, scoped, tag = 'scoped memory for tpu_custom_call.1']
    #allocation7 [shape = 'u8[196608]{0}', space=vmem, size = 0x30000, scoped, tag = 'input window, operand 2, single buffered']
    #allocation8 [shape = 'u8[16384]{0}', space=vmem, size = 0x4000, scoped, tag = 'output window, operand 0']
    %9 = vsyncpa [#allocation3], 0
    %s10 = scalar_lea.sflag [#allocation3], 1
    %11 = vsyncpa %s10, 0
    %12 = vsyncpa [#allocation6], 0
    %s13 = scalar_lea.sflag [#allocation6], 1
    %14 = vsyncpa %s13, 0
    %15 = vsyncpa [#allocation4], 0
    %s16 = scalar_lea.sflag [#allocation4], 1
    %17 = vsyncpa %s16, 0
    loop: start=0, step=1, limit=4
    $region2: #{tpu_custom_call.1} parent=1 // loop_pre_header
      _
    $region3: #{tpu_custom_call.1} parent=1 // loop_header
      %s19 = sphi 0, %s23
      %p20 = scmp.ge.s32.totalorder %s19, 4
      %s26 = sphi 0, %s38
      %s27 = sphi 0, %s34
      %s28 = sphi 0, %s26
      %s29 = sphi 0, %s27
      %s30 = sphi 0, %s28
      %s31 = sphi 0, %s29
      %s49 = sphi 0, %s51
      %s52 = sphi 0, %s49
      %s53 = sphi 0, %s52
      %s69 = sphi 0, %s53
      %s77 = sphi 0, %s79
      %s80 = sphi 0, %s77
      %s81 = sphi 0, %s80
      %s97 = sphi 0, %s81
      %s101 = sphi 0, %s101
      %s103 = sphi 0, %s101
      %s104 = sphi 0, %s103
      %s118 = sphi 0, %s104
      %s122 = sphi 0, %s122
      %s124 = sphi 0, %s122
      %s125 = sphi 0, %s124
      %s139 = sphi 0, %s125
      %s147 = sphi 0, %s149
      %s150 = sphi 0, %s147
      %s151 = sphi 0, %s150
      %s167 = sphi 0, %s151
    $region4: #{tpu_custom_call.1} parent=1 // loop_header_branch
      %22 = sbr.rel (%p20) target = $region8
    $region5: #{tpu_custom_call.1} parent=1 // loop_body
      %s24 = ssub.s32 %s19, 1
      %s25 = ssub.s32 %s19, 2
      %s32 = sadd.s32 1, %s27
      %p33 = scmp.ge.s32.totalorder %s32, 1
      %s34 = scalar_select %p33, 0, %s32
      %s35 = sadd.s32 1, %s26
      %s36 = scalar_select %p33, %s35, %s26
      %p37 = scmp.ge.s32.totalorder %s36, 2
      %s38 = scalar_select %p37, 0, %s36
      %s39 = ssub.s32 %s27, 1
      %p40 = scmp.gt.s32.totalorder %s39, 0
      %s41 = scalar_select %p40, %s39, 0
      %s42 = ssub.s32 %s34, 1
      %p43 = scmp.gt.s32.totalorder %s42, 0
      %s44 = scalar_select %p43, %s42, 0
      %s45 = ssub.s32 %s26, %s38
      %s46 = ssub.s32 %s41, %s44
      %s47 = sor.u32 %s45, %s46
      %p48 = scmp.eq.s32.totalorder %s47, 0
      %s50 = sadd.s32 %s49, 1
      %s51 = scalar_select %p48, %s49, %s50
      %p54 = pneg %p48
      %p55 = scmp.eq.s32.totalorder %s19, 1
      %p56 = por %p54, %p55
      %p57 = scmp.ne.s32.totalorder %s49, %s52
      %p58 = scmp.eq.s32.totalorder %s19, 0
      %p59 = por %p57, %p58
      %p60 = scmp.ne.s32.totalorder %s49, %s52
      %p61 = scmp.eq.s32.totalorder %s24, 1
      %p62 = por %p60, %p61
      %p63 = scmp.ne.s32.totalorder %s52, %s53
      %p64 = scmp.eq.s32.totalorder %s24, 0
      %p65 = por %p63, %p64
      %p66 = scmp.ne.s32.totalorder %s52, %s53
      %p67 = scmp.eq.s32.totalorder %s25, 1
      %p68 = por %p66, %p67
      %p70 = scmp.ne.s32.totalorder %s53, %s69
      %p71 = scmp.eq.s32.totalorder %s25, 0
      %p72 = por %p70, %p71
      %s73 = ssub.s32 %s26, %s38
      %s74 = ssub.s32 %s27, %s34
      %s75 = sor.u32 %s73, %s74
      %p76 = scmp.eq.s32.totalorder %s75, 0
      %s78 = sadd.s32 %s77, 1
      %s79 = scalar_select %p76, %s77, %s78
      %p82 = pneg %p76
      %p83 = scmp.eq.s32.totalorder %s19, 1
      %p84 = por %p82, %p83
      %p85 = scmp.ne.s32.totalorder %s77, %s80
      %p86 = scmp.eq.s32.totalorder %s19, 0
      %p87 = por %p85, %p86
      %p88 = scmp.ne.s32.totalorder %s77, %s80
      %p89 = scmp.eq.s32.totalorder %s24, 1
      %p90 = por %p88, %p89
      %p91 = scmp.ne.s32.totalorder %s80, %s81
      %p92 = scmp.eq.s32.totalorder %s24, 0
      %p93 = por %p91, %p92
      %p94 = scmp.ne.s32.totalorder %s80, %s81
      %p95 = scmp.eq.s32.totalorder %s25, 1
      %p96 = por %p94, %p95
      %p98 = scmp.ne.s32.totalorder %s81, %s97
      %p99 = scmp.eq.s32.totalorder %s25, 0
      %p100 = por %p98, %p99
      %s102 = sadd.s32 %s101, 1
      %p105 = scmp.eq.s32.totalorder %s19, 1
      %p106 = scmp.ne.s32.totalorder %s101, %s103
      %p107 = scmp.eq.s32.totalorder %s19, 0
      %p108 = por %p106, %p107
      %p109 = scmp.ne.s32.totalorder %s101, %s103
      %p110 = scmp.eq.s32.totalorder %s24, 1
      %p111 = por %p109, %p110
      %p112 = scmp.ne.s32.totalorder %s103, %s104
      %p113 = scmp.eq.s32.totalorder %s24, 0
      %p114 = por %p112, %p113
      %p115 = scmp.ne.s32.totalorder %s103, %s104
      %p116 = scmp.eq.s32.totalorder %s25, 1
      %p117 = por %p115, %p116
      %p119 = scmp.ne.s32.totalorder %s104, %s118
      %p120 = scmp.eq.s32.totalorder %s25, 0
      %p121 = por %p119, %p120
      %s123 = sadd.s32 %s122, 1
      %p126 = scmp.eq.s32.totalorder %s19, 1
      %p127 = scmp.ne.s32.totalorder %s122, %s124
      %p128 = scmp.eq.s32.totalorder %s19, 0
      %p129 = por %p127, %p128
      %p130 = scmp.ne.s32.totalorder %s122, %s124
      %p131 = scmp.eq.s32.totalorder %s24, 1
      %p132 = por %p130, %p131
      %p133 = scmp.ne.s32.totalorder %s124, %s125
      %p134 = scmp.eq.s32.totalorder %s24, 0
      %p135 = por %p133, %p134
      %p136 = scmp.ne.s32.totalorder %s124, %s125
      %p137 = scmp.eq.s32.totalorder %s25, 1
      %p138 = por %p136, %p137
      %p140 = scmp.ne.s32.totalorder %s125, %s139
      %p141 = scmp.eq.s32.totalorder %s25, 0
      %p142 = por %p140, %p141
      %s143 = ssub.s32 %s26, %s38
      %s144 = ssub.s32 %s27, %s34
      %s145 = sor.u32 %s143, %s144
      %p146 = scmp.eq.s32.totalorder %s145, 0
      %s148 = sadd.s32 %s147, 1
      %s149 = scalar_select %p146, %s147, %s148
      %p152 = pneg %p146
      %p153 = scmp.eq.s32.totalorder %s19, 1
      %p154 = por %p152, %p153
      %p155 = scmp.ne.s32.totalorder %s147, %s150
      %p156 = scmp.eq.s32.totalorder %s19, 0
      %p157 = por %p155, %p156
      %p158 = scmp.ne.s32.totalorder %s147, %s150
      %p159 = scmp.eq.s32.totalorder %s24, 1
      %p160 = por %p158, %p159
      %p161 = scmp.ne.s32.totalorder %s150, %s151
      %p162 = scmp.eq.s32.totalorder %s24, 0
      %p163 = por %p161, %p162
      %p164 = scmp.ne.s32.totalorder %s150, %s151
      %p165 = scmp.eq.s32.totalorder %s25, 1
      %p166 = por %p164, %p165
      %p168 = scmp.ne.s32.totalorder %s151, %s167
      %p169 = scmp.eq.s32.totalorder %s25, 0
      %p170 = por %p168, %p169
      %p171 = scmp.le.s32.totalorder 1, %s19
      %p172 = scmp.lt.s32.totalorder %s19, 3
      %p173 = pnand %p171, %p172
      %p174 = pneg %p173
      // Predicated region
      $region9: #{tpu_custom_call.1} parent=5 // pred_check
        _
      $region10: #{tpu_custom_call.1} parent=5 // pred_check_branch
        %176 = sbr.rel (%p173) target = $region12
      $region11: #{tpu_custom_call.1} parent=5 // pred_region
        %s177 = ssub.s32 %s19, 1
        // Predicated region
        $region13: #{tpu_custom_call.1} parent=11 // pred_check
          %p178 = pneg %p114
        $region14: #{tpu_custom_call.1} parent=11 // pred_check_branch
          %180 = sbr.rel (%p178) target = $region16
        $region15: #{tpu_custom_call.1} parent=11 // pred_region
          %182 = vsyncadd [#allocation6], 0
          %s183 = sshll.u32 %s2, 4
          %s184 = int_to_ptr.hbm [resolvable:$true] %s183
          %s185 = sshll.u32 [#allocation7], 4
          %s186 = int_to_ptr.vmem [resolvable:$true] %s185
          %191 = dma.hbm_to_vmem [thread:$0]  %s184, 6144, %s186, [#allocation6], 128, 128, 8
        $region16: #{tpu_custom_call.1} parent=11 // pred_fallthru
          _
        // Predicated region
        $region17: #{tpu_custom_call.1} parent=11 // pred_check
          %p192 = pneg %p135
        $region18: #{tpu_custom_call.1} parent=11 // pred_check_branch
          %194 = sbr.rel (%p192) target = $region20
        $region19: #{tpu_custom_call.1} parent=11 // pred_region
          _
        $region20: #{tpu_custom_call.1} parent=11 // pred_fallthru
          _
      $region12: #{tpu_custom_call.1} parent=5 // pred_fallthru
        _
      %p195 = scmp.lt.s32.totalorder %s19, 2
      // Predicated region
      $region21: #{tpu_custom_call.1} parent=5 // pred_check
        %p196 = pneg %p195
      $region22: #{tpu_custom_call.1} parent=5 // pred_check_branch
        %198 = sbr.rel (%p196) target = $region24
      $region23: #{tpu_custom_call.1} parent=5 // pred_region
        // Predicated region
        $region25: #{tpu_custom_call.1} parent=23 // pred_check
          %p199 = pneg %p59
        $region26: #{tpu_custom_call.1} parent=23 // pred_check_branch
          %201 = sbr.rel (%p199) target = $region28
        $region27: #{tpu_custom_call.1} parent=23 // pred_region
          %s202 = sand.u32 %s49, 1
          %s203 = scalar_lea.sflag [#allocation3], %s202
          %s204 = sand.u32 %s49, 1
          %s205 = smul.addr %s204, 16
          %s206 = scalar_lea.vmem [#allocation2], %s205
          %s207 = ssub.s32 %s27, 1
          %p208 = scmp.gt.s32.totalorder %s207, 0
          %s209 = scalar_select %p208, %s207, 0
          %s210 = smul.u32 2, %s209
          %212 = vsyncadd %s203, 0
          %s213 = smul.addr %s26, 2
          %s214 = sadd.s32 %s210, %s213
          %s215 = smul.addr %s214, 8
          %s216 = scalar_lea.hbm %s0, %s215
          %s217 = sshll.u32 %s216, 4
          %s218 = int_to_ptr.hbm [resolvable:$true] %s217
          %s219 = sshll.u32 %s206, 4
          %s220 = int_to_ptr.vmem [resolvable:$true] %s219
          %225 = dma.hbm_to_vmem [thread:$0]  %s218, 256, %s220, %s203, 128, 128, 8
        $region28: #{tpu_custom_call.1} parent=23 // pred_fallthru
          _
        // Predicated region
        $region29: #{tpu_custom_call.1} parent=23 // pred_check
          %p226 = pneg %p87
        $region30: #{tpu_custom_call.1} parent=23 // pred_check_branch
          %228 = sbr.rel (%p226) target = $region32
        $region31: #{tpu_custom_call.1} parent=23 // pred_region
          %s229 = sand.u32 %s19, 1
          %s230 = scalar_lea.sflag [#allocation6], %s229
          %s231 = sand.u32 %s77, 1
          %s232 = smul.addr %s231, 16
          %s233 = scalar_lea.vmem [#allocation5], %s232
          %s234 = smul.u32 2, %s27
          %236 = vsyncadd %s230, 0
          %s237 = smul.addr %s26, 2
          %s238 = sadd.s32 %s234, %s237
          %s239 = smul.addr %s238, 8
          %s240 = scalar_lea.hbm %s1, %s239
          %s241 = sshll.u32 %s240, 4
          %s242 = int_to_ptr.hbm [resolvable:$true] %s241
          %s243 = sshll.u32 %s233, 4
          %s244 = int_to_ptr.vmem [resolvable:$true] %s243
          %249 = dma.hbm_to_vmem [thread:$0]  %s242, 256, %s244, %s230, 128, 128, 8
        $region32: #{tpu_custom_call.1} parent=23 // pred_fallthru
          _
      $region24: #{tpu_custom_call.1} parent=5 // pred_fallthru
        _
      %p250 = scmp.le.s32.totalorder 1, %s19
      %p251 = scmp.lt.s32.totalorder %s19, 3
      %p252 = pnand %p250, %p251
      %p253 = pneg %p252
      // Predicated region
      $region33: #{tpu_custom_call.1} parent=5 // pred_check
        _
      $region34: #{tpu_custom_call.1} parent=5 // pred_check_branch
        %255 = sbr.rel (%p252) target = $region36
      $region35: #{tpu_custom_call.1} parent=5 // pred_region
        %s256 = ssub.s32 %s19, 1
        %s257 = sand.u32 %s52, 1
        %s258 = scalar_lea.sflag [#allocation3], %s257
        %s259 = sand.u32 %s52, 1
        %s260 = smul.addr %s259, 16
        %s261 = scalar_lea.vmem [#allocation2], %s260
        // Predicated region
        $region37: #{tpu_custom_call.1} parent=35 // pred_check
          %p262 = pneg %p65
        $region38: #{tpu_custom_call.1} parent=35 // pred_check_branch
          %264 = sbr.rel (%p262) target = $region40
        $region39: #{tpu_custom_call.1} parent=35 // pred_region
          %266 = dma.done %s258, 256
        $region40: #{tpu_custom_call.1} parent=35 // pred_fallthru
          _
        %s267 = sand.u32 %s24, 1
        %s268 = scalar_lea.sflag [#allocation6], %s267
        %s269 = sand.u32 %s80, 1
        %s270 = smul.addr %s269, 16
        %s271 = scalar_lea.vmem [#allocation5], %s270
        // Predicated region
        $region41: #{tpu_custom_call.1} parent=35 // pred_check
          %p272 = pneg %p93
        $region42: #{tpu_custom_call.1} parent=35 // pred_check_branch
          %274 = sbr.rel (%p272) target = $region44
        $region43: #{tpu_custom_call.1} parent=35 // pred_region
          %276 = dma.done %s268, 256
        $region44: #{tpu_custom_call.1} parent=35 // pred_fallthru
          _
        // Predicated region
        $region45: #{tpu_custom_call.1} parent=35 // pred_check
          %p277 = pneg %p114
        $region46: #{tpu_custom_call.1} parent=35 // pred_check_branch
          %279 = sbr.rel (%p277) target = $region48
        $region47: #{tpu_custom_call.1} parent=35 // pred_region
          %281 = dma.done [#allocation6], 6144
        $region48: #{tpu_custom_call.1} parent=35 // pred_fallthru
          _
        %s282 = sand.u32 %s52, 1
        %s283 = scalar_lea.sflag [#allocation3], %s282
        %s284 = sand.u32 %s52, 1
        %s285 = smul.addr %s284, 16
        %s286 = scalar_lea.vmem [#allocation2], %s285
        %p287 = pneg %p65
        %p288 = pneg %p62
        %s289 = sand.u32 %s24, 1
        %s290 = scalar_lea.sflag [#allocation6], %s289
        %s291 = sand.u32 %s80, 1
        %s292 = smul.addr %s291, 16
        %s293 = scalar_lea.vmem [#allocation5], %s292
        %p294 = pneg %p93
        %p295 = pneg %p90
        %p296 = pneg %p114
        %p297 = pneg %p111
        %p298 = pneg %p135
        %p299 = pneg %p132
        %p300 = pneg %p163
        %p301 = pneg %p160
        %s302 = sand.u32 %s150, 1
        %s303 = scalar_lea.sflag [#allocation4], %s302
        %s304 = sand.u32 %s150, 1
        %s305 = smul.addr %s304, 16
        %s306 = scalar_lea.vmem [#allocation8], %s305
        %s307 = ssub.s32 %s29, 1
        %p308 = scmp.gt.s32.totalorder %s307, 0
        %s309 = scalar_select %p308, %s307, 0
        %s310 = smul.u32 2, %s309
        %s311 = smul.u32 2, %s29
        %s312 = smul.u32 2, %s29
        %v313 = vld [vmem:[%s261 + $0x8] sm:$0xff]
        %p314 = scmp.gt.s32.totalorder %s29, 0
        %s315 = scalar_select %p314, 1, 0
        %s316 = scvt.s32.f32 %s315
        %v317 = vstv %s316
        %v318 = vmul.f32 %v313, %v317
        %v319 = vld [vmem:[%s271] sm:$0xff]
        %v320 = vld [vmem:[%s271 + $0x8] sm:$0xff]
        %vm324 = vcmask 1045504
        %v325 = vrot.slane %v318, 2
        %v326 = vrot.slane %v319, 2
        %v327 = vsel %vm324, %v325, %v326
        %v328 = vrot.slane %v320, 2
        %v329 = vsel %vm324, %v326, %v328
        %vm330 = vcmask 1043456
        %v331 = vrot.slane %v319, 4
        %v332 = vrot.slane %v320, 4
        %v333 = vsel %vm330, %v331, %v332
        %v334 = vld [vmem:[#allocation7] sm:$0xff]
        %v335 = vld [vmem:[#allocation7 + $0x8] sm:$0xff]
        %v336 = vld [vmem:[#allocation7 + $0x10] sm:$0xff]
        %v337 = vld [vmem:[#allocation7 + $0x18] sm:$0xff]
        %v338 = vld [vmem:[#allocation7 + $0x20] sm:$0xff]
        %v339 = vld [vmem:[#allocation7 + $0x28] sm:$0xff]
        %v340 = vld [vmem:[#allocation7 + $0x30] sm:$0xff]
        %v341 = vld [vmem:[#allocation7 + $0x38] sm:$0xff]
        %v342 = vld [vmem:[#allocation7 + $0x40] sm:$0xff]
        %v343 = vld [vmem:[#allocation7 + $0x48] sm:$0xff]
        %v344 = vld [vmem:[#allocation7 + $0x50] sm:$0xff]
        %v345 = vld [vmem:[#allocation7 + $0x58] sm:$0xff]
        %v346 = vld [vmem:[#allocation7 + $0x60] sm:$0xff]
        %v347 = vld [vmem:[#allocation7 + $0x68] sm:$0xff]
        %v348 = vld [vmem:[#allocation7 + $0x70] sm:$0xff]
        %v349 = vld [vmem:[#allocation7 + $0x78] sm:$0xff]
        %v350 = vld [vmem:[#allocation7 + $0x80] sm:$0xff]
        %v351 = vld [vmem:[#allocation7 + $0x88] sm:$0xff]
        %v352 = vld [vmem:[#allocation7 + $0x90] sm:$0xff]
        %v353 = vld [vmem:[#allocation7 + $0x98] sm:$0xff]
        %v354 = vld [vmem:[#allocation7 + $0xa0] sm:$0xff]
        %v355 = vld [vmem:[#allocation7 + $0xa8] sm:$0xff]
        %v356 = vld [vmem:[#allocation7 + $0xb0] sm:$0xff]
        %v357 = vld [vmem:[#allocation7 + $0xb8] sm:$0xff]
        %v358 = vld [vmem:[#allocation7 + $0xc0] sm:$0xff]
        %v359 = vld [vmem:[#allocation7 + $0xc8] sm:$0xff]
        %v360 = vld [vmem:[#allocation7 + $0xd0] sm:$0xff]
        %v361 = vld [vmem:[#allocation7 + $0xd8] sm:$0xff]
        %v362 = vld [vmem:[#allocation7 + $0xe0] sm:$0xff]
        %v363 = vld [vmem:[#allocation7 + $0xe8] sm:$0xff]
        %v364 = vld [vmem:[#allocation7 + $0xf0] sm:$0xff]
        %v365 = vld [vmem:[#allocation7 + $0xf8] sm:$0xff]
        %v366 = vld [vmem:[#allocation7 + $0x100] sm:$0xff]
        %v367 = vld [vmem:[#allocation7 + $0x108] sm:$0xff]
        %v368 = vld [vmem:[#allocation7 + $0x110] sm:$0xff]
        %v369 = vld [vmem:[#allocation7 + $0x118] sm:$0xff]
        %v370 = vld [vmem:[#allocation7 + $0x120] sm:$0xff]
        %v371 = vld [vmem:[#allocation7 + $0x128] sm:$0xff]
        %v372 = vld [vmem:[#allocation7 + $0x130] sm:$0xff]
        %v373 = vld [vmem:[#allocation7 + $0x138] sm:$0xff]
        %v374 = vld [vmem:[#allocation7 + $0x140] sm:$0xff]
        %v375 = vld [vmem:[#allocation7 + $0x148] sm:$0xff]
        %v376 = vld [vmem:[#allocation7 + $0x150] sm:$0xff]
        %v377 = vld [vmem:[#allocation7 + $0x158] sm:$0xff]
        %v378 = vld [vmem:[#allocation7 + $0x160] sm:$0xff]
        %v379 = vld [vmem:[#allocation7 + $0x168] sm:$0xff]
        %v380 = vld [vmem:[#allocation7 + $0x170] sm:$0xff]
        %v381 = vld [vmem:[#allocation7 + $0x178] sm:$0xff]
        %v382 = vld [vmem:[%s3] sm:$0x1]
        %v384 = vperm.slane %v382, 0
        %v386 = vrot.slane %v318, 4
        %v387 = vsel %vm330, %v386, %v331
        %v388 = vrot.slane %v327, 4
        %v389 = vrot.slane %v329, 4
        %v390 = vsel %vm330, %v388, %v389
        %v391 = vrot.slane %v331, 4
        %v392 = vrot.slane %v333, 4
        %v393 = vsel %vm330, %v391, %v392
        %v394 = vrot.slane %v328, 4
        %v395 = vsel %vm330, %v389, %v394
        %v396 = vrot.slane %v332, 4
        %v397 = vsel %vm330, %v392, %v396
        %404 = vmatpush.msra.mxu0 %v349
        %405 = vmatpush.msra.mxu0 %v348
        %406 = vmatpush.msra.mxu0 %v347
        %407 = vmatpush.msra.mxu0 %v346
        %408 = vmatpush.msra.mxu0 %v345
        %409 = vmatpush.msra.mxu0 %v344
        %410 = vmatpush.msra.mxu0 %v343
        %411 = vmatpush.msra.mxu0 %v342
        %412 = vmatpush.msra.mxu0 %v341
        %413 = vmatpush.msra.mxu0 %v340
        %414 = vmatpush.msra.mxu0 %v339
        %415 = vmatpush.msra.mxu0 %v338
        %416 = vmatpush.msra.mxu0 %v337
        %417 = vmatpush.msra.mxu0 %v336
        %418 = vmatpush.msra.mxu0 %v335
        %419 = vmatpush.msra.mxu0 %v334
        %420 = vmatmul.f32.gmra.mxu0 %v387
        %v421 = vpop.f32.mrf.mxu0
        %v422 = vadd.f32 %v384, %v421
        %423 = vmatmul.f32.gmra.mxu0 %v333
        %v424 = vpop.f32.mrf.mxu0
        %v425 = vadd.f32 %v384, %v424
        %426 = vdwg.mxu0
        %427 = vmatpush.msra.mxu0 %v365
        %428 = vmatpush.msra.mxu0 %v364
        %429 = vmatpush.msra.mxu0 %v363
        %430 = vmatpush.msra.mxu0 %v362
        %431 = vmatpush.msra.mxu0 %v361
        %432 = vmatpush.msra.mxu0 %v360
        %433 = vmatpush.msra.mxu0 %v359
        %434 = vmatpush.msra.mxu0 %v358
        %435 = vmatpush.msra.mxu0 %v357
        %436 = vmatpush.msra.mxu0 %v356
        %437 = vmatpush.msra.mxu0 %v355
        %438 = vmatpush.msra.mxu0 %v354
        %439 = vmatpush.msra.mxu0 %v353
        %440 = vmatpush.msra.mxu0 %v352
        %441 = vmatpush.msra.mxu0 %v351
        %442 = vmatpush.msra.mxu0 %v350
        %443 = vmatmul.f32.gmra.mxu0 %v390
        %v444 = vpop.f32.mrf.mxu0
        %v445 = vadd.f32 %v422, %v444
        %446 = vmatmul.f32.gmra.mxu0 %v395
        %v447 = vpop.f32.mrf.mxu0
        %v448 = vadd.f32 %v425, %v447
        %449 = vdwg.mxu0
        %450 = vmatpush.msra.mxu0 %v381
        %451 = vmatpush.msra.mxu0 %v380
        %452 = vmatpush.msra.mxu0 %v379
        %453 = vmatpush.msra.mxu0 %v378
        %454 = vmatpush.msra.mxu0 %v377
        %455 = vmatpush.msra.mxu0 %v376
        %456 = vmatpush.msra.mxu0 %v375
        %457 = vmatpush.msra.mxu0 %v374
        %458 = vmatpush.msra.mxu0 %v373
        %459 = vmatpush.msra.mxu0 %v372
        %460 = vmatpush.msra.mxu0 %v371
        %461 = vmatpush.msra.mxu0 %v370
        %462 = vmatpush.msra.mxu0 %v369
        %463 = vmatpush.msra.mxu0 %v368
        %464 = vmatpush.msra.mxu0 %v367
        %465 = vmatpush.msra.mxu0 %v366
        %466 = vmatmul.f32.gmra.mxu0 %v393
        %v467 = vpop.f32.mrf.mxu0
        %v468 = vadd.f32 %v445, %v467
        %469 = vmatmul.f32.gmra.mxu0 %v397
        %v470 = vpop.f32.mrf.mxu0
        %v471 = vadd.f32 %v448, %v470
        %472 = vdwg.mxu0
        %v473 = vmax.f32 %v468, 0.0
        %v474 = vmax.f32 %v471, 0.0
        %475 = vst [vmem:[%s306] sm:$0xff] %v473
        %476 = vst [vmem:[%s306 + $0x8] sm:$0xff] %v474
        %s477 = sand.u32 %s150, 1
        %s478 = scalar_lea.sflag [#allocation4], %s477
        %s479 = sand.u32 %s150, 1
        %s480 = smul.addr %s479, 16
        %s481 = scalar_lea.vmem [#allocation8], %s480
        // Predicated region
        $region49: #{tpu_custom_call.1} parent=35 // pred_check
          %p482 = pneg %p160
        $region50: #{tpu_custom_call.1} parent=35 // pred_check_branch
          %484 = sbr.rel (%p482) target = $region52
        $region51: #{tpu_custom_call.1} parent=35 // pred_region
          %s485 = smul.u32 2, %s29
          %487 = vsyncadd %s478, 0
          %s488 = smul.addr %s28, 2
          %s489 = sadd.s32 %s485, %s488
          %s490 = smul.addr %s489, 8
          %s491 = scalar_lea.hbm %s4, %s490
          %s492 = sshll.u32 %s481, 4
          %s493 = int_to_ptr.vmem [resolvable:$true] %s492
          %s494 = sshll.u32 %s491, 4
          %s495 = int_to_ptr.hbm [resolvable:$true] %s494
          %500 = dma.vmem_to_hbm [thread:$0]  %s493, 256, %s495, %s478, 128, 128, 8
        $region52: #{tpu_custom_call.1} parent=35 // pred_fallthru
          _
      $region36: #{tpu_custom_call.1} parent=5 // pred_fallthru
        _
      %p501 = scmp.le.s32.totalorder 2, %s19
      // Predicated region
      $region53: #{tpu_custom_call.1} parent=5 // pred_check
        %p502 = pneg %p501
      $region54: #{tpu_custom_call.1} parent=5 // pred_check_branch
        %504 = sbr.rel (%p502) target = $region56
      $region55: #{tpu_custom_call.1} parent=5 // pred_region
        %s505 = ssub.s32 %s19, 2
        // Predicated region
        $region57: #{tpu_custom_call.1} parent=55 // pred_check
          %p506 = pneg %p166
        $region58: #{tpu_custom_call.1} parent=55 // pred_check_branch
          %508 = sbr.rel (%p506) target = $region60
        $region59: #{tpu_custom_call.1} parent=55 // pred_region
          %s509 = sand.u32 %s151, 1
          %s510 = scalar_lea.sflag [#allocation4], %s509
          %s511 = sand.u32 %s151, 1
          %s512 = smul.addr %s511, 16
          %s513 = scalar_lea.vmem [#allocation8], %s512
          %515 = dma.done %s510, 256
        $region60: #{tpu_custom_call.1} parent=55 // pred_fallthru
          _
      $region56: #{tpu_custom_call.1} parent=5 // pred_fallthru
        _
    $region6: #{tpu_custom_call.1} parent=1 // loop_footer
      %s23 = sadd.s32 1, %s19
    $region7: #{tpu_custom_call.1} parent=1 // loop_footer_branch
      %18 = sbr.rel target = $region3
    $region8: #{tpu_custom_call.1} parent=1 // loop_exit
      _
    %516 = vsyncpa [#allocation3], 1
    %s517 = scalar_lea.sflag [#allocation3], 1
    %518 = vsyncpa %s517, 1
    %519 = vsyncpa [#allocation6], 1
    %s520 = scalar_lea.sflag [#allocation6], 1
    %521 = vsyncpa %s520, 1
    %522 = vsyncpa [#allocation4], 1
    %s523 = scalar_lea.sflag [#allocation4], 1
    %524 = vsyncpa %s523, 1

</llo_original>
